<compile_context>
chip_gen: v7x
topology: tpu7x:2x2x1
jax: 0.10.0
libtpu: 0.0.40
codegen_flags: <defaults>
</compile_context>

<pallas_src>
import jax
import jax.numpy as jnp
from jax.experimental import pallas as pl
from jax.experimental.pallas import tpu as pltpu


def _round_up(n, m):
    return ((n + m - 1) // m) * m


def _cdiv(a, b):
    return -(-a // b)


def mlp_kernel(x_ref, w1_ref, b1_ref, w2_ref, b2_ref, o_ref, acc_ref):
    """One (batch-tile, hidden-tile) step of  out = (x @ W1 + b1) @ W2 + b2."""
    k = pl.program_id(1)

    @pl.when(k == 0)
    def _init():
        acc_ref[...] = jnp.zeros_like(acc_ref)

    # hidden slab = x @ W1[:, slab] + b1[slab]   (MXU bf16 in, f32 accumulate)
    h = jnp.dot(x_ref[...], w1_ref[...], preferred_element_type=jnp.float32)
    h = (h + b1_ref[...]).astype(jnp.bfloat16)   # Dropout(0.1) eval mode == identity
    # accumulate this slab's contribution to the output tile
    acc_ref[...] += jnp.dot(h, w2_ref[...], preferred_element_type=jnp.float32)

    @pl.when(k == pl.num_programs(1) - 1)
    def _finalize():
        o_ref[...] = (acc_ref[...] + b2_ref[...]).astype(o_ref.dtype)


def _vmem_budget_bytes():
    """Returns (tile budget, physical VMEM capacity) — generation aware."""
    try:
        cap = int(pltpu.get_tpu_info().vmem_capacity_bytes)
    except Exception:
        cap = 64 * 1024 * 1024   # conservative fallback (v7x-sized VMEM)
    return int(cap * 0.72), cap


def mlp_classifier_forward(x, w1, b1, w2, b2, *, block_batch=512,
                           block_hidden=None, out_dtype=None):
    """x:[B,I], w1:[I,H], b1:[H], w2:[H,O], b2:[O] -> [B,O]."""
    B, I = x.shape
    H = w1.shape[1]
    O = w2.shape[1]
    out_dtype = x.dtype if out_dtype is None else out_dtype
    out_isz = jnp.dtype(out_dtype).itemsize

    # Lane-dense padding only (multiples of 128): extra MXU-shaped padding would
    # just add DMA bytes on this HBM-bound workload.
    I_p = _round_up(I, 128)
    H_p = _round_up(H, 128)
    O_p = _round_up(O, 128)
    B16 = _round_up(B, 16)            # bf16 sublane pack; NOT padded up to TB

    budget, vmem_cap = _vmem_budget_bytes()

    def vmem_usage(tb, th):
        # Conservative: assumes the pipeline keeps 2 buffers for every operand
        # (even resident ones), plus the f32 accumulator and both copies of h.
        return (2 * tb * I_p * 2                      # x stream (bf16)
                + 2 * tb * O_p * out_isz              # out stream
                + 2 * (I_p * th + th * O_p) * 2       # W1 / W2 tiles (bf16)
                + 2 * (th + O_p) * 4                  # b1 / b2 tiles (f32)
                + tb * O_p * 4                        # f32 accumulator scratch
                + tb * th * (4 + 2))                  # h in f32 + bf16 copy

    # Hidden-tile candidates: multiples of 128 that divide H_p, largest first.
    th_cands = [t for t in range(H_p, 0, -128) if H_p % t == 0]
    if block_hidden is not None:
        req = max(128, _round_up(int(block_hidden), 128))
        th_cands = [t for t in th_cands if t <= req] or [th_cands[-1]]

    # Batch tile: multiple of 16, prefer 256-512, >= 2 grid steps for big B
    # (keeps both v7x TensorCores busy; harmless on single-TC chips).
    TB = _round_up(min(block_batch, B16), 16)
    if B16 >= 256:
        TB = min(TB, _round_up(_cdiv(B16, 2), 16))

    tb, TH = TB, th_cands[-1]
    while True:
        fitting = [t for t in th_cands if vmem_usage(tb, t) <= budget]
        if fitting:
            TB, TH = tb, fitting[0]
            break
        if tb <= 128:                 # stop shrinking TB; stream the hidden dim
            TB, TH = tb, th_cands[-1]
            break
        tb = max(128, _round_up(tb // 2, 16))

    nb = _cdiv(B16, TB)
    nh = H_p // TH

    # --- one fused cast+pad expression per operand -----------------------------
    x_p = jnp.pad(x.astype(jnp.bfloat16), ((0, B16 - B), (0, I_p - I)))
    w1_p = jnp.pad(w1.astype(jnp.bfloat16), ((0, I_p - I), (0, H_p - H)))
    w2_p = jnp.pad(w2.astype(jnp.bfloat16), ((0, H_p - H), (0, O_p - O)))
    b1_p = jnp.pad(b1.astype(jnp.float32), (0, H_p - H)).reshape(1, H_p)
    b2_p = jnp.pad(b2.astype(jnp.float32), (0, O_p - O)).reshape(1, O_p)

    cost = pl.CostEstimate(
        flops=2 * B16 * (I_p * H_p + H_p * O_p),
        transcendentals=0,
        bytes_accessed=(x_p.size * 2
                        + (w1_p.size + w2_p.size) * 2 * (1 if nh == 1 else nb)
                        + (b1_p.size + b2_p.size) * 4
                        + B16 * O_p * out_isz),
    )
    vmem_limit = max(32 * 1024 * 1024, int(vmem_cap * 0.85))

    def make_call(single_buffer_resident):
        # Resident (constant-index) weight blocks only need one buffer; streamed
        # ones (nh > 1) keep the default double-buffering.
        res = ({"pipeline_mode": pl.Buffered(1)}
               if (single_buffer_resident and nh == 1) else {})
        return pl.pallas_call(
            mlp_kernel,
            out_shape=jax.ShapeDtypeStruct((B16, O_p), out_dtype),
            grid=(nb, nh),
            in_specs=[
                pl.BlockSpec((TB, I_p), lambda i, k: (i, 0)),         # x stream
                pl.BlockSpec((I_p, TH), lambda i, k: (0, k), **res),  # W1
                pl.BlockSpec((1, TH), lambda i, k: (0, k), **res),    # b1
                pl.BlockSpec((TH, O_p), lambda i, k: (k, 0), **res),  # W2
                pl.BlockSpec((1, O_p), lambda i, k: (0, 0), **res),   # b2
            ],
            out_specs=pl.BlockSpec((TB, O_p), lambda i, k: (i, 0)),
            scratch_shapes=[pltpu.VMEM((TB, O_p), jnp.float32)],
            compiler_params=pltpu.CompilerParams(
                dimension_semantics=("parallel", "arbitrary"),
                vmem_limit_bytes=vmem_limit,
            ),
            cost_estimate=cost,
        )

    try:
        out_p = make_call(True)(x_p, w1_p, b1_p, w2_p, b2_p)
    except Exception:
        # pl.Buffered(1) not accepted on this build: fall back to default
        # double-buffering (the VMEM estimate above already assumed 2 buffers).
        out_p = make_call(False)(x_p, w1_p, b1_p, w2_p, b2_p)

    return out_p[:B, :O]


def init_params(key, num_input, num_hidden, num_output):
    """Deterministic init mimicking nn.Linear's uniform(-1/sqrt(fan_in), 1/sqrt(fan_in))."""
    k1, k2, k3, k4 = jax.random.split(key, 4)
    lim1 = 1.0 / (num_input ** 0.5)
    lim2 = 1.0 / (num_hidden ** 0.5)
    w1 = jax.random.uniform(k1, (num_input, num_hidden), jnp.float32, -lim1, lim1)
    b1 = jax.random.uniform(k2, (num_hidden,), jnp.float32, -lim1, lim1)
    w2 = jax.random.uniform(k3, (num_hidden, num_output), jnp.float32, -lim2, lim2)
    b2 = jax.random.uniform(k4, (num_output,), jnp.float32, -lim2, lim2)
    return w1, b1, w2, b2


if __name__ == "__main__":
    key = jax.random.PRNGKey(0)
    kx, kp, kx2, kp2, kx3 = jax.random.split(key, 5)

    # --- test 1: tiny shapes (B=8, I=32, H=32, O=8), single-step grid ----------
    B, I, H, O = 8, 32, 32, 8
    x = jax.random.normal(kx, (B, I), dtype=jnp.float32)
    w1, b1, w2, b2 = init_params(kp, I, H, O)

    out = jax.block_until_ready(mlp_classifier_forward(x, w1, b1, w2, b2))
    ref = (x @ w1 + b1) @ w2 + b2
    assert out.shape == (B, O)
    assert jnp.allclose(out, ref, atol=5e-2, rtol=5e-2)

    # --- test 2: non-aligned batch, multi-step batch grid ----------------------
    B2 = 200
    x2 = jax.random.normal(kx2, (B2, I), dtype=jnp.float32)
    out2 = jax.block_until_ready(
        mlp_classifier_forward(x2, w1, b1, w2, b2, block_batch=64))
    ref2 = (x2 @ w1 + b1) @ w2 + b2
    assert out2.shape == (B2, O)
    assert jnp.allclose(out2, ref2, atol=5e-2, rtol=5e-2)

    # --- test 3: hidden-dim tiling path (nh > 1: accumulator + pl.when) --------
    B3, I3, H3, O3 = 48, 64, 256, 16
    x3 = jax.random.normal(kx3, (B3, I3), dtype=jnp.float32)
    w1b, b1b, w2b, b2b = init_params(kp2, I3, H3, O3)
    out3 = jax.block_until_ready(
        mlp_classifier_forward(x3, w1b, b1b, w2b, b2b, block_hidden=128))
    ref3 = (x3 @ w1b + b1b) @ w2b + b2b
    assert out3.shape == (B3, O3)
    assert jnp.allclose(out3, ref3, atol=5e-2, rtol=5e-2)

    print("KERNEL_OK")
</pallas_src>

<mosaic_0001>
module attributes {stable_mosaic.version = 11 : i64} {
  func.func @mlp_kernel(%arg0: i32, %arg1: i32, %arg2: memref<16x128xbf16, #tpu.memory_space<vmem>>, %arg3: memref<128x128xbf16, #tpu.memory_space<vmem>>, %arg4: memref<1x128xf32, #tpu.memory_space<vmem>>, %arg5: memref<128x128xbf16, #tpu.memory_space<vmem>>, %arg6: memref<1x128xf32, #tpu.memory_space<vmem>>, %arg7: memref<16x128xf32, #tpu.memory_space<vmem>>, %arg8: memref<16x128xf32, #tpu.memory_space<vmem>>) attributes {dimension_semantics = [#tpu.dimension_semantics<parallel>, #tpu.dimension_semantics<arbitrary>], iteration_bounds = array<i64: 1, 1>, scalar_prefetch = 0 : i64, scratch_operands = 1 : i64, tpu.core_type = #tpu.core_type<tc>, window_params = [{transform_indices = @transform_0, window_bounds = array<i64: 16, 128>}, {pipeline_mode = #tpu.pipeline_mode<synchronous>, transform_indices = @transform_1, window_bounds = array<i64: 128, 128>}, {pipeline_mode = #tpu.pipeline_mode<synchronous>, transform_indices = @transform_2, window_bounds = array<i64: 1, 128>}, {pipeline_mode = #tpu.pipeline_mode<synchronous>, transform_indices = @transform_3, window_bounds = array<i64: 128, 128>}, {pipeline_mode = #tpu.pipeline_mode<synchronous>, transform_indices = @transform_4, window_bounds = array<i64: 1, 128>}, {transform_indices = @transform_5, window_bounds = array<i64: 16, 128>}]} {
    %c0_i32 = arith.constant 0 : i32
    %0 = arith.cmpi eq, %arg1, %c0_i32 : i32
    %1 = arith.extui %0 : i1 to i32
    %c0_i32_0 = arith.constant 0 : i32
    %2 = arith.cmpi ne, %1, %c0_i32_0 : i32
    scf.if %2 {
      %cst_15 = arith.constant 0.000000e+00 : f32
      %18 = vector.broadcast %cst_15 : f32 to vector<16x128xf32>
      %c0_16 = arith.constant 0 : index
      %c0_17 = arith.constant 0 : index
      %19 = vector.load %arg8[%c0_16, %c0_17] : memref<16x128xf32, #tpu.memory_space<vmem>>, vector<16x128xf32>
      tpu.vector_store %arg8[%c0_16, %c0_17], %18 {strides = array<i32>} : memref<16x128xf32, #tpu.memory_space<vmem>>, vector<16x128xf32>,
    } else {
    }
    %c0 = arith.constant 0 : index
    %c0_1 = arith.constant 0 : index
    %3 = vector.load %arg2[%c0, %c0_1] : memref<16x128xbf16, #tpu.memory_space<vmem>>, vector<16x128xbf16>
    %c0_2 = arith.constant 0 : index
    %c0_3 = arith.constant 0 : index
    %4 = vector.load %arg3[%c0_2, %c0_3] : memref<128x128xbf16, #tpu.memory_space<vmem>>, vector<128x128xbf16>
    %cst = arith.constant dense<0.000000e+00> : vector<16x128xf32>
    %5 = tpu.matmul %3, %4, %cst {dimension_numbers = #tpu.dot_dimension_numbers<[1], [0], [0], [1], [0, 0, 1, 1], [], []>} : vector<16x128xbf16>, vector<128x128xbf16>, vector<16x128xf32> -> vector<16x128xf32>
    %c0_4 = arith.constant 0 : index
    %c0_5 = arith.constant 0 : index
    %6 = vector.load %arg4[%c0_4, %c0_5] : memref<1x128xf32, #tpu.memory_space<vmem>>, vector<1x128xf32>
    %7 = vector.broadcast %6 : vector<1x128xf32> to vector<16x128xf32>
    %8 = arith.addf %5, %7 : vector<16x128xf32>
    %9 = arith.truncf %8 : vector<16x128xf32> to vector<16x128xbf16>
    %c0_6 = arith.constant 0 : index
    %c0_7 = arith.constant 0 : index
    %10 = vector.load %arg8[%c0_6, %c0_7] : memref<16x128xf32, #tpu.memory_space<vmem>>, vector<16x128xf32>
    %c0_8 = arith.constant 0 : index
    %c0_9 = arith.constant 0 : index
    %11 = vector.load %arg5[%c0_8, %c0_9] : memref<128x128xbf16, #tpu.memory_space<vmem>>, vector<128x128xbf16>
    %cst_10 = arith.constant dense<0.000000e+00> : vector<16x128xf32>
    %12 = tpu.matmul %9, %11, %cst_10 {dimension_numbers = #tpu.dot_dimension_numbers<[1], [0], [0], [1], [0, 0, 1, 1], [], []>} : vector<16x128xbf16>, vector<128x128xbf16>, vector<16x128xf32> -> vector<16x128xf32>
    %13 = arith.addf %10, %12 : vector<16x128xf32>
    %c0_11 = arith.constant 0 : index
    %c0_12 = arith.constant 0 : index
    %14 = vector.load %arg8[%c0_11, %c0_12] : memref<16x128xf32, #tpu.memory_space<vmem>>, vector<16x128xf32>
    tpu.vector_store %arg8[%c0_11, %c0_12], %13 {strides = array<i32>} : memref<16x128xf32, #tpu.memory_space<vmem>>, vector<16x128xf32>,
    %c0_i32_13 = arith.constant 0 : i32
    %15 = arith.cmpi eq, %arg1, %c0_i32_13 : i32
    %16 = arith.extui %15 : i1 to i32
    %c0_i32_14 = arith.constant 0 : i32
    %17 = arith.cmpi ne, %16, %c0_i32_14 : i32
    scf.if %17 {
      %c0_15 = arith.constant 0 : index
      %c0_16 = arith.constant 0 : index
      %18 = vector.load %arg8[%c0_15, %c0_16] : memref<16x128xf32, #tpu.memory_space<vmem>>, vector<16x128xf32>
      %c0_17 = arith.constant 0 : index
      %c0_18 = arith.constant 0 : index
      %19 = vector.load %arg6[%c0_17, %c0_18] : memref<1x128xf32, #tpu.memory_space<vmem>>, vector<1x128xf32>
      %20 = vector.broadcast %19 : vector<1x128xf32> to vector<16x128xf32>
      %21 = arith.addf %18, %20 : vector<16x128xf32>
      %c0_19 = arith.constant 0 : index
      %c0_20 = arith.constant 0 : index
      %22 = vector.load %arg7[%c0_19, %c0_20] : memref<16x128xf32, #tpu.memory_space<vmem>>, vector<16x128xf32>
      tpu.vector_store %arg7[%c0_19, %c0_20], %21 {strides = array<i32>} : memref<16x128xf32, #tpu.memory_space<vmem>>, vector<16x128xf32>,
    } else {
    }
    return
  }
  func.func @transform_0(%arg0: i32, %arg1: i32) -> (i32, i32) {
    %c0_i32 = arith.constant 0 : i32
    %c0_i32_0 = arith.constant 0 : i32
    return %arg0, %c0_i32 : i32, i32
  }
  func.func @transform_1(%arg0: i32, %arg1: i32) -> (i32, i32) {
    %c0_i32 = arith.constant 0 : i32
    %c0_i32_0 = arith.constant 0 : i32
    return %c0_i32, %arg1 : i32, i32
  }
  func.func @transform_2(%arg0: i32, %arg1: i32) -> (i32, i32) {
    %c0_i32 = arith.constant 0 : i32
    %c0_i32_0 = arith.constant 0 : i32
    return %c0_i32, %arg1 : i32, i32
  }
  func.func @transform_3(%arg0: i32, %arg1: i32) -> (i32, i32) {
    %c0_i32 = arith.constant 0 : i32
    %c0_i32_0 = arith.constant 0 : i32
    return %arg1, %c0_i32 : i32, i32
  }
  func.func @transform_4(%arg0: i32, %arg1: i32) -> (i32, i32) {
    %c0_i32 = arith.constant 0 : i32
    %c0_i32_0 = arith.constant 0 : i32
    %c0_i32_1 = arith.constant 0 : i32
    return %c0_i32, %c0_i32_0 : i32, i32
  }
  func.func @transform_5(%arg0: i32, %arg1: i32) -> (i32, i32) {
    %c0_i32 = arith.constant 0 : i32
    %c0_i32_0 = arith.constant 0 : i32
    return %arg0, %c0_i32 : i32, i32
  }
}

module attributes {stable_mosaic.version = 11 : i64} {
  func.func @mlp_kernel(%arg0: i32, %arg1: i32, %arg2: memref<16x128xbf16, #tpu.memory_space<vmem>>, %arg3: memref<128x128xbf16, #tpu.memory_space<vmem>>, %arg4: memref<1x128xf32, #tpu.memory_space<vmem>>, %arg5: memref<128x128xbf16, #tpu.memory_space<vmem>>, %arg6: memref<1x128xf32, #tpu.memory_space<vmem>>, %arg7: memref<16x128xf32, #tpu.memory_space<vmem>>, %arg8: memref<16x128xf32, #tpu.memory_space<vmem>>) attributes {dimension_semantics = [#tpu.dimension_semantics<parallel>, #tpu.dimension_semantics<arbitrary>], iteration_bounds = array<i64: 1, 1>, scalar_prefetch = 0 : i64, scratch_operands = 1 : i64, tpu.core_type = #tpu.core_type<tc>, window_params = [{transform_indices = @transform_0, window_bounds = array<i64: 16, 128>}, {transform_indices = @transform_1, window_bounds = array<i64: 128, 128>}, {transform_indices = @transform_2, window_bounds = array<i64: 1, 128>}, {transform_indices = @transform_3, window_bounds = array<i64: 128, 128>}, {pipeline_mode = #tpu.pipeline_mode<synchronous>, transform_indices = @transform_4, window_bounds = array<i64: 1, 128>}, {transform_indices = @transform_5, window_bounds = array<i64: 16, 128>}]} {
    %c0_i32 = arith.constant 0 : i32
    %0 = arith.cmpi eq, %arg1, %c0_i32 : i32
    %1 = arith.extui %0 : i1 to i32
    %c0_i32_0 = arith.constant 0 : i32
    %2 = arith.cmpi ne, %1, %c0_i32_0 : i32
    scf.if %2 {
      %cst_15 = arith.constant 0.000000e+00 : f32
      %18 = vector.broadcast %cst_15 : f32 to vector<16x128xf32>
      %c0_16 = arith.constant 0 : index
      %c0_17 = arith.constant 0 : index
      %19 = vector.load %arg8[%c0_16, %c0_17] : memref<16x128xf32, #tpu.memory_space<vmem>>, vector<16x128xf32>
      tpu.vector_store %arg8[%c0_16, %c0_17], %18 {strides = array<i32>} : memref<16x128xf32, #tpu.memory_space<vmem>>, vector<16x128xf32>,
    } else {
    }
    %c0 = arith.constant 0 : index
    %c0_1 = arith.constant 0 : index
    %3 = vector.load %arg2[%c0, %c0_1] : memref<16x128xbf16, #tpu.memory_space<vmem>>, vector<16x128xbf16>
    %c0_2 = arith.constant 0 : index
    %c0_3 = arith.constant 0 : index
    %4 = vector.load %arg3[%c0_2, %c0_3] : memref<128x128xbf16, #tpu.memory_space<vmem>>, vector<128x128xbf16>
    %cst = arith.constant dense<0.000000e+00> : vector<16x128xf32>
    %5 = tpu.matmul %3, %4, %cst {dimension_numbers = #tpu.dot_dimension_numbers<[1], [0], [0], [1], [0, 0, 1, 1], [], []>} : vector<16x128xbf16>, vector<128x128xbf16>, vector<16x128xf32> -> vector<16x128xf32>
    %c0_4 = arith.constant 0 : index
    %c0_5 = arith.constant 0 : index
    %6 = vector.load %arg4[%c0_4, %c0_5] : memref<1x128xf32, #tpu.memory_space<vmem>>, vector<1x128xf32>
    %7 = vector.broadcast %6 : vector<1x128xf32> to vector<16x128xf32>
    %8 = arith.addf %5, %7 : vector<16x128xf32>
    %9 = arith.truncf %8 : vector<16x128xf32> to vector<16x128xbf16>
    %c0_6 = arith.constant 0 : index
    %c0_7 = arith.constant 0 : index
    %10 = vector.load %arg8[%c0_6, %c0_7] : memref<16x128xf32, #tpu.memory_space<vmem>>, vector<16x128xf32>
    %c0_8 = arith.constant 0 : index
    %c0_9 = arith.constant 0 : index
    %11 = vector.load %arg5[%c0_8, %c0_9] : memref<128x128xbf16, #tpu.memory_space<vmem>>, vector<128x128xbf16>
    %cst_10 = arith.constant dense<0.000000e+00> : vector<16x128xf32>
    %12 = tpu.matmul %9, %11, %cst_10 {dimension_numbers = #tpu.dot_dimension_numbers<[1], [0], [0], [1], [0, 0, 1, 1], [], []>} : vector<16x128xbf16>, vector<128x128xbf16>, vector<16x128xf32> -> vector<16x128xf32>
    %13 = arith.addf %10, %12 : vector<16x128xf32>
    %c0_11 = arith.constant 0 : index
    %c0_12 = arith.constant 0 : index
    %14 = vector.load %arg8[%c0_11, %c0_12] : memref<16x128xf32, #tpu.memory_space<vmem>>, vector<16x128xf32>
    tpu.vector_store %arg8[%c0_11, %c0_12], %13 {strides = array<i32>} : memref<16x128xf32, #tpu.memory_space<vmem>>, vector<16x128xf32>,
    %c0_i32_13 = arith.constant 0 : i32
    %15 = arith.cmpi eq, %arg1, %c0_i32_13 : i32
    %16 = arith.extui %15 : i1 to i32
    %c0_i32_14 = arith.constant 0 : i32
    %17 = arith.cmpi ne, %16, %c0_i32_14 : i32
    scf.if %17 {
      %c0_15 = arith.constant 0 : index
      %c0_16 = arith.constant 0 : index
      %18 = vector.load %arg8[%c0_15, %c0_16] : memref<16x128xf32, #tpu.memory_space<vmem>>, vector<16x128xf32>
      %c0_17 = arith.constant 0 : index
      %c0_18 = arith.constant 0 : index
      %19 = vector.load %arg6[%c0_17, %c0_18] : memref<1x128xf32, #tpu.memory_space<vmem>>, vector<1x128xf32>
      %20 = vector.broadcast %19 : vector<1x128xf32> to vector<16x128xf32>
      %21 = arith.addf %18, %20 : vector<16x128xf32>
      %c0_19 = arith.constant 0 : index
      %c0_20 = arith.constant 0 : index
      %22 = vector.load %arg7[%c0_19, %c0_20] : memref<16x128xf32, #tpu.memory_space<vmem>>, vector<16x128xf32>
      tpu.vector_store %arg7[%c0_19, %c0_20], %21 {strides = array<i32>} : memref<16x128xf32, #tpu.memory_space<vmem>>, vector<16x128xf32>,
    } else {
    }
    return
  }
  func.func @transform_0(%arg0: i32, %arg1: i32) -> (i32, i32) {
    %c0_i32 = arith.constant 0 : i32
    %c0_i32_0 = arith.constant 0 : i32
    return %arg0, %c0_i32 : i32, i32
  }
  func.func @transform_1(%arg0: i32, %arg1: i32) -> (i32, i32) {
    %c0_i32 = arith.constant 0 : i32
    %c0_i32_0 = arith.constant 0 : i32
    return %c0_i32, %arg1 : i32, i32
  }
  func.func @transform_2(%arg0: i32, %arg1: i32) -> (i32, i32) {
    %c0_i32 = arith.constant 0 : i32
    %c0_i32_0 = arith.constant 0 : i32
    return %c0_i32, %arg1 : i32, i32
  }
  func.func @transform_3(%arg0: i32, %arg1: i32) -> (i32, i32) {
    %c0_i32 = arith.constant 0 : i32
    %c0_i32_0 = arith.constant 0 : i32
    return %arg1, %c0_i32 : i32, i32
  }
  func.func @transform_4(%arg0: i32, %arg1: i32) -> (i32, i32) {
    %c0_i32 = arith.constant 0 : i32
    %c0_i32_0 = arith.constant 0 : i32
    %c0_i32_1 = arith.constant 0 : i32
    return %c0_i32, %c0_i32_0 : i32, i32
  }
  func.func @transform_5(%arg0: i32, %arg1: i32) -> (i32, i32) {
    %c0_i32 = arith.constant 0 : i32
    %c0_i32_0 = arith.constant 0 : i32
    return %arg0, %c0_i32 : i32, i32
  }
}

</mosaic_0001>

<llo_original>
// kernel: tpu_custom_call.1
$region0: #{tpu_custom_call.1}
  #allocation0 [shape = 'u32[]', space=smem, size = 0x4, offset = 0x4, fixed_abs, tag = 'smem constant byte address 0x4 - core index']
  #allocation1 [shape = 'u32[144,128]{1,0:T(1,128)}', space=vmem, size = 0x12000, scoped, tag = 'internal scratch']
  #allocation2 [shape = 'f32[16,128]{1,0:T(8,128)}', space=vmem, size = 0x2000, scoped, tag = 'scratch operand']
  %s0 = inlined_call_operand.hbm [shape: bf16[16,128], index: 0, kind: input, shape index: {}]
  %s1 = inlined_call_operand.hbm [shape: bf16[128,128], index: 1, kind: input, shape index: {}]
  %s2 = inlined_call_operand.vmem [shape: f32[1,128], index: 2, kind: input, shape index: {}]
  %s3 = inlined_call_operand.hbm [shape: bf16[128,128], index: 3, kind: input, shape index: {}]
  %s4 = inlined_call_operand.vmem [shape: f32[1,128], index: 4, kind: input, shape index: {}]
  %s5 = inlined_call_operand.hbm [shape: f32[16,128], index: 5, kind: output, shape index: {}]
  %s6 = sld [smem:[#allocation0]]
  $region50: #{tpu_custom_call.1} parent=0
    _
  %s8 = ssub.s32 1, %s6
  %s9 = scalar_select 0, %s8, %s6
  $region1: #{tpu_custom_call.1} parent=0
    #allocation3 [shape = 'u8[4096]{0}', space=vmem, size = 0x1000, scoped, tag = 'input window, operand 0, single buffered']
    #allocation4 [shape = 's32[1]{0}', space=sflag, size = 0x4, scoped, tag = 'scoped memory for tpu_custom_call.1']
    #allocation5 [shape = 's32[1]{0}', space=sflag, size = 0x4, scoped, tag = 'scoped memory for tpu_custom_call.1']
    #allocation6 [shape = 'u8[32768]{0}', space=vmem, size = 0x8000, scoped, tag = 'input window, operand 1, single buffered']
    #allocation7 [shape = 's32[1]{0}', space=sflag, size = 0x4, scoped, tag = 'scoped memory for tpu_custom_call.1']
    #allocation8 [shape = 'u8[32768]{0}', space=vmem, size = 0x8000, scoped, tag = 'input window, operand 3, single buffered']
    #allocation9 [shape = 'u8[8192]{0}', space=vmem, size = 0x2000, scoped, tag = 'output window, operand 0, single buffered']
    %10 = vsyncpa [#allocation4], 0
    %11 = vsyncpa [#allocation7], 0
    %12 = vsyncpa [#allocation5], 0
    // Predicated region
    $region2: #{tpu_custom_call.1} parent=1 // pred_check
      _
    $region3: #{tpu_custom_call.1} parent=1 // pred_check_branch
      %14 = sbr.rel (0) target = $region5
    $region4: #{tpu_custom_call.1} parent=1 // pred_region
      %s16 = ssub.s32 128, 128
      %17 = vsyncadd [#allocation4], %s16
      %s18 = sshll.u32 [#allocation3], 4
      %s19 = int_to_ptr.vmem [resolvable:$true] %s18
      %24 = dma.hbm_to_vmem [thread:$0]  %s0, 128, %s19, [#allocation4], 64, 64, 4
    $region5: #{tpu_custom_call.1} parent=1 // pred_fallthru
      _
    // Predicated region
    $region6: #{tpu_custom_call.1} parent=1 // pred_check
      _
    $region7: #{tpu_custom_call.1} parent=1 // pred_check_branch
      %26 = sbr.rel (0) target = $region9
    $region8: #{tpu_custom_call.1} parent=1 // pred_region
      %s28 = ssub.s32 1024, 1024
      %29 = vsyncadd [#allocation7], %s28
      %s30 = sshll.u32 [#allocation6], 4
      %s31 = int_to_ptr.vmem [resolvable:$true] %s30
      %36 = dma.hbm_to_vmem [thread:$0]  %s1, 1024, %s31, [#allocation7], 64, 64, 4
    $region9: #{tpu_custom_call.1} parent=1 // pred_fallthru
      _
    // Predicated region
    $region10: #{tpu_custom_call.1} parent=1 // pred_check
      _
    $region11: #{tpu_custom_call.1} parent=1 // pred_check_branch
      %38 = sbr.rel (0) target = $region13
    $region12: #{tpu_custom_call.1} parent=1 // pred_region
      _
    $region13: #{tpu_custom_call.1} parent=1 // pred_fallthru
      _
    // Predicated region
    $region14: #{tpu_custom_call.1} parent=1 // pred_check
      _
    $region15: #{tpu_custom_call.1} parent=1 // pred_check_branch
      %40 = sbr.rel (0) target = $region17
    $region16: #{tpu_custom_call.1} parent=1 // pred_region
      %s42 = ssub.s32 1024, 1024
      %43 = vsyncadd [#allocation7], %s42
      %s44 = sshll.u32 [#allocation8], 4
      %s45 = int_to_ptr.vmem [resolvable:$true] %s44
      %50 = dma.hbm_to_vmem [thread:$0]  %s3, 1024, %s45, [#allocation7], 64, 64, 4
    $region17: #{tpu_custom_call.1} parent=1 // pred_fallthru
      _
    // Predicated region
    $region18: #{tpu_custom_call.1} parent=1 // pred_check
      _
    $region19: #{tpu_custom_call.1} parent=1 // pred_check_branch
      %52 = sbr.rel (0) target = $region21
    $region20: #{tpu_custom_call.1} parent=1 // pred_region
      _
    $region21: #{tpu_custom_call.1} parent=1 // pred_fallthru
      _
    // Predicated region
    $region22: #{tpu_custom_call.1} parent=1 // pred_check
      _
    $region23: #{tpu_custom_call.1} parent=1 // pred_check_branch
      %54 = sbr.rel (0) target = $region25
    $region24: #{tpu_custom_call.1} parent=1 // pred_region
      %55 = dma.done [#allocation4], 128
    $region25: #{tpu_custom_call.1} parent=1 // pred_fallthru
      _
    // Predicated region
    $region26: #{tpu_custom_call.1} parent=1 // pred_check
      _
    $region27: #{tpu_custom_call.1} parent=1 // pred_check_branch
      %57 = sbr.rel (0) target = $region29
    $region28: #{tpu_custom_call.1} parent=1 // pred_region
      %58 = dma.done [#allocation7], 1024
    $region29: #{tpu_custom_call.1} parent=1 // pred_fallthru
      _
    // Predicated region
    $region30: #{tpu_custom_call.1} parent=1 // pred_check
      _
    $region31: #{tpu_custom_call.1} parent=1 // pred_check_branch
      %60 = sbr.rel (0) target = $region33
    $region32: #{tpu_custom_call.1} parent=1 // pred_region
      %61 = dma.done [#allocation7], 1024
    $region33: #{tpu_custom_call.1} parent=1 // pred_fallthru
      _
    %p63 = scmp.eq.s32.totalorder 0, 0
    // Predicated region
    $region34: #{tpu_custom_call.1} parent=1 // pred_check
      %p64 = pneg %p63
    $region35: #{tpu_custom_call.1} parent=1 // pred_check_branch
      %66 = sbr.rel (%p64) target = $region37
    $region36: #{tpu_custom_call.1} parent=1 // pred_region
      %67 = vst [vmem:[#allocation2] sm:$0xff] 0.0
      %68 = vst [vmem:[#allocation2 + $0x8] sm:$0xff] 0.0
    $region37: #{tpu_custom_call.1} parent=1 // pred_fallthru
      _
    %v69 = vld [vmem:[#allocation3] sm:$0xf]
    %v70 = vld [vmem:[#allocation3 + $0x4] sm:$0xf]
    %v71 = vld [vmem:[#allocation6] sm:$0xf]
    %v72 = vld [vmem:[#allocation6 + $0x4] sm:$0xf]
    %v73 = vld [vmem:[#allocation6 + $0x8] sm:$0xf]
    %v74 = vld [vmem:[#allocation6 + $0xc] sm:$0xf]
    %v75 = vld [vmem:[#allocation6 + $0x10] sm:$0xf]
    %v76 = vld [vmem:[#allocation6 + $0x14] sm:$0xf]
    %v77 = vld [vmem:[#allocation6 + $0x18] sm:$0xf]
    %v78 = vld [vmem:[#allocation6 + $0x1c] sm:$0xf]
    %v79 = vld [vmem:[#allocation6 + $0x20] sm:$0xf]
    %v80 = vld [vmem:[#allocation6 + $0x24] sm:$0xf]
    %v81 = vld [vmem:[#allocation6 + $0x28] sm:$0xf]
    %v82 = vld [vmem:[#allocation6 + $0x2c] sm:$0xf]
    %v83 = vld [vmem:[#allocation6 + $0x30] sm:$0xf]
    %v84 = vld [vmem:[#allocation6 + $0x34] sm:$0xf]
    %v85 = vld [vmem:[#allocation6 + $0x38] sm:$0xf]
    %v86 = vld [vmem:[#allocation6 + $0x3c] sm:$0xf]
    %v87 = vld [vmem:[%s2] sm:$0x1]
    %v89 = vlaneseq
    %v90 = vshrl.u32 %v89, 7
    %v91 = vsub.s32 0, %v90
    %v92 = vrot.slane %v87, %v91
    %v96 = vunpack.c.l.b16 %v69
    %v97 = vunpack.c.l.b16 %v70
    %v98 = vpack.c.b16 %v97, %v96
    %v116 = vunpack.c.l.b16 %v71
    %v117 = vunpack.c.l.b16 %v72
    %v118 = vunpack.c.l.b16 %v73
    %v119 = vunpack.c.l.b16 %v74
    %v120 = vunpack.c.l.b16 %v75
    %v121 = vunpack.c.l.b16 %v76
    %v122 = vunpack.c.l.b16 %v77
    %v123 = vunpack.c.l.b16 %v78
    %v124 = vunpack.c.l.b16 %v79
    %v125 = vunpack.c.l.b16 %v80
    %v126 = vunpack.c.l.b16 %v81
    %v127 = vunpack.c.l.b16 %v82
    %v128 = vunpack.c.l.b16 %v83
    %v129 = vunpack.c.l.b16 %v84
    %v130 = vunpack.c.l.b16 %v85
    %v131 = vunpack.c.l.b16 %v86
    %v132 = vpack.c.b16 %v117, %v116
    %v133 = vpack.c.b16 %v119, %v118
    %v134 = vpack.c.b16 %v121, %v120
    %v135 = vpack.c.b16 %v123, %v122
    %v136 = vpack.c.b16 %v125, %v124
    %v137 = vpack.c.b16 %v127, %v126
    %v138 = vpack.c.b16 %v129, %v128
    %v139 = vpack.c.b16 %v131, %v130
    %148 = vmatprep.subr.bf16.mxu0 0
    %149 = vmatpush1.bf16.msra.mxu0 %v132
    %150 = vmatprep.subr.bf16.mxu0 0
    %151 = vmatpush1.bf16.msra.mxu0 %v133
    %152 = vmatprep.subr.bf16.mxu0 0
    %153 = vmatpush1.bf16.msra.mxu0 %v134
    %154 = vmatprep.subr.bf16.mxu0 0
    %155 = vmatpush1.bf16.msra.mxu0 %v135
    %156 = vmatprep.subr.bf16.mxu0 0
    %157 = vmatpush1.bf16.msra.mxu0 %v136
    %158 = vmatprep.subr.bf16.mxu0 0
    %159 = vmatpush1.bf16.msra.mxu0 %v137
    %160 = vmatprep.subr.bf16.mxu0 0
    %161 = vmatpush1.bf16.msra.mxu0 %v138
    %162 = vmatprep.subr.bf16.mxu0 0
    %163 = vmatpush1.bf16.msra.mxu0 %v139
    %164 = vmatprep.subr.bf16.mxu0 0
    %165 = vmatpush1.bf16.msra.mxu0 0
    %166 = vmatprep.subr.bf16.mxu0 0
    %167 = vmatpush1.bf16.msra.mxu0 0
    %168 = vmatprep.subr.bf16.mxu0 0
    %169 = vmatpush1.bf16.msra.mxu0 0
    %170 = vmatprep.subr.bf16.mxu0 0
    %171 = vmatpush1.bf16.msra.mxu0 0
    %172 = vmatprep.subr.bf16.mxu0 0
    %173 = vmatpush1.bf16.msra.mxu0 0
    %174 = vmatprep.subr.bf16.mxu0 0
    %175 = vmatpush1.bf16.msra.mxu0 0
    %176 = vmatprep.subr.bf16.mxu0 0
    %177 = vmatpush1.bf16.msra.mxu0 0
    %178 = vmatprep.subr.bf16.mxu0 0
    %179 = vmatpush1.bf16.msra.mxu0 0
    %180 = vmatprep.mubr.bf16.mxu0 0
    %181 = vmatmul.mubr.bf16.gmra.mrb[0].mxu0 %v98
    %v182 = vpop.f32.mrb[0].mxu0
    %v183 = vadd.f32 %v92, %v182
    %v184 = vpop.f32.mrb[0].mxu0
    %v185 = vpop.f32.mrb[0].mxu0
    %v186 = vadd.f32 %v92, %v185
    %v187 = vpop.f32.mrb[0].mxu0
    %188 = vdwg.mxu0
    %v189 = vpack.c.bf16 %v186, %v183
    %v190 = vld [vmem:[#allocation2] sm:$0xff]
    %v191 = vld [vmem:[#allocation2 + $0x8] sm:$0xff]
    %v192 = vld [vmem:[#allocation8] sm:$0xf]
    %v193 = vld [vmem:[#allocation8 + $0x4] sm:$0xf]
    %v194 = vld [vmem:[#allocation8 + $0x8] sm:$0xf]
    %v195 = vld [vmem:[#allocation8 + $0xc] sm:$0xf]
    %v196 = vld [vmem:[#allocation8 + $0x10] sm:$0xf]
    %v197 = vld [vmem:[#allocation8 + $0x14] sm:$0xf]
    %v198 = vld [vmem:[#allocation8 + $0x18] sm:$0xf]
    %v199 = vld [vmem:[#allocation8 + $0x1c] sm:$0xf]
    %v200 = vld [vmem:[#allocation8 + $0x20] sm:$0xf]
    %v201 = vld [vmem:[#allocation8 + $0x24] sm:$0xf]
    %v202 = vld [vmem:[#allocation8 + $0x28] sm:$0xf]
    %v203 = vld [vmem:[#allocation8 + $0x2c] sm:$0xf]
    %v204 = vld [vmem:[#allocation8 + $0x30] sm:$0xf]
    %v205 = vld [vmem:[#allocation8 + $0x34] sm:$0xf]
    %v206 = vld [vmem:[#allocation8 + $0x38] sm:$0xf]
    %v207 = vld [vmem:[#allocation8 + $0x3c] sm:$0xf]
    %v224 = vunpack.c.l.b16 %v192
    %v225 = vunpack.c.l.b16 %v193
    %v226 = vunpack.c.l.b16 %v194
    %v227 = vunpack.c.l.b16 %v195
    %v228 = vunpack.c.l.b16 %v196
    %v229 = vunpack.c.l.b16 %v197
    %v230 = vunpack.c.l.b16 %v198
    %v231 = vunpack.c.l.b16 %v199
    %v232 = vunpack.c.l.b16 %v200
    %v233 = vunpack.c.l.b16 %v201
    %v234 = vunpack.c.l.b16 %v202
    %v235 = vunpack.c.l.b16 %v203
    %v236 = vunpack.c.l.b16 %v204
    %v237 = vunpack.c.l.b16 %v205
    %v238 = vunpack.c.l.b16 %v206
    %v239 = vunpack.c.l.b16 %v207
    %v240 = vpack.c.b16 %v225, %v224
    %v241 = vpack.c.b16 %v227, %v226
    %v242 = vpack.c.b16 %v229, %v228
    %v243 = vpack.c.b16 %v231, %v230
    %v244 = vpack.c.b16 %v233, %v232
    %v245 = vpack.c.b16 %v235, %v234
    %v246 = vpack.c.b16 %v237, %v236
    %v247 = vpack.c.b16 %v239, %v238
    %256 = vmatprep.subr.bf16.mxu0 0
    %257 = vmatpush1.bf16.msra.mxu0 %v240
    %258 = vmatprep.subr.bf16.mxu0 0
    %259 = vmatpush1.bf16.msra.mxu0 %v241
    %260 = vmatprep.subr.bf16.mxu0 0
    %261 = vmatpush1.bf16.msra.mxu0 %v242
    %262 = vmatprep.subr.bf16.mxu0 0
    %263 = vmatpush1.bf16.msra.mxu0 %v243
    %264 = vmatprep.subr.bf16.mxu0 0
    %265 = vmatpush1.bf16.msra.mxu0 %v244
    %266 = vmatprep.subr.bf16.mxu0 0
    %267 = vmatpush1.bf16.msra.mxu0 %v245
    %268 = vmatprep.subr.bf16.mxu0 0
    %269 = vmatpush1.bf16.msra.mxu0 %v246
    %270 = vmatprep.subr.bf16.mxu0 0
    %271 = vmatpush1.bf16.msra.mxu0 %v247
    %272 = vmatprep.subr.bf16.mxu0 0
    %273 = vmatpush1.bf16.msra.mxu0 0
    %274 = vmatprep.subr.bf16.mxu0 0
    %275 = vmatpush1.bf16.msra.mxu0 0
    %276 = vmatprep.subr.bf16.mxu0 0
    %277 = vmatpush1.bf16.msra.mxu0 0
    %278 = vmatprep.subr.bf16.mxu0 0
    %279 = vmatpush1.bf16.msra.mxu0 0
    %280 = vmatprep.subr.bf16.mxu0 0
    %281 = vmatpush1.bf16.msra.mxu0 0
    %282 = vmatprep.subr.bf16.mxu0 0
    %283 = vmatpush1.bf16.msra.mxu0 0
    %284 = vmatprep.subr.bf16.mxu0 0
    %285 = vmatpush1.bf16.msra.mxu0 0
    %286 = vmatprep.subr.bf16.mxu0 0
    %287 = vmatpush1.bf16.msra.mxu0 0
    %288 = vmatprep.mubr.bf16.mxu0 0
    %289 = vmatmul.mubr.bf16.gmra.mrb[0].mxu0 %v189
    %v290 = vpop.f32.mrb[0].mxu0
    %v291 = vadd.f32 0.0, %v290
    %v292 = vpop.f32.mrb[0].mxu0
    %v293 = vpop.f32.mrb[0].mxu0
    %v294 = vadd.f32 0.0, %v293
    %v295 = vpop.f32.mrb[0].mxu0
    %296 = vdwg.mxu0
    %v297 = vadd.f32 %v190, %v291
    %v298 = vadd.f32 %v191, %v294
    %299 = vst [vmem:[#allocation2] sm:$0xff] %v297
    %300 = vst [vmem:[#allocation2 + $0x8] sm:$0xff] %v298
    // Predicated region
    $region38: #{tpu_custom_call.1} parent=1 // pred_check
      %p301 = pneg %p63
    $region39: #{tpu_custom_call.1} parent=1 // pred_check_branch
      %303 = sbr.rel (%p301) target = $region41
    $region40: #{tpu_custom_call.1} parent=1 // pred_region
      %v304 = vld [vmem:[#allocation2] sm:$0xff]
      %v305 = vld [vmem:[#allocation2 + $0x8] sm:$0xff]
      %v306 = vld [vmem:[%s4] sm:$0x1]
      %v308 = vlaneseq
      %v309 = vshrl.u32 %v308, 7
      %v310 = vsub.s32 0, %v309
      %v311 = vrot.slane %v306, %v310
      %v313 = vadd.f32 %v304, %v311
      %v314 = vadd.f32 %v305, %v311
      %315 = vst [vmem:[#allocation9] sm:$0xff] %v313
      %316 = vst [vmem:[#allocation9 + $0x8] sm:$0xff] %v314
    $region41: #{tpu_custom_call.1} parent=1 // pred_fallthru
      _
    // Predicated region
    $region42: #{tpu_custom_call.1} parent=1 // pred_check
      _
    $region43: #{tpu_custom_call.1} parent=1 // pred_check_branch
      %318 = sbr.rel (0) target = $region45
    $region44: #{tpu_custom_call.1} parent=1 // pred_region
      %s320 = ssub.s32 256, 256
      %321 = vsyncadd [#allocation5], %s320
      %s322 = sshll.u32 [#allocation9], 4
      %s323 = int_to_ptr.vmem [resolvable:$true] %s322
      %328 = dma.vmem_to_hbm [thread:$0]  %s323, 256, %s5, [#allocation5], 128, 128, 8
    $region45: #{tpu_custom_call.1} parent=1 // pred_fallthru
      _
    // Predicated region
    $region46: #{tpu_custom_call.1} parent=1 // pred_check
      _
    $region47: #{tpu_custom_call.1} parent=1 // pred_check_branch
      %330 = sbr.rel (0) target = $region49
    $region48: #{tpu_custom_call.1} parent=1 // pred_region
      %331 = dma.done [#allocation5], 256
    $region49: #{tpu_custom_call.1} parent=1 // pred_fallthru
      _
    %332 = vsyncpa [#allocation4], 1
    %333 = vsyncpa [#allocation7], 1
    %334 = vsyncpa [#allocation5], 1

// kernel: tpu_custom_call.1
$region0: #{tpu_custom_call.1}
  #allocation0 [shape = 'u32[]', space=smem, size = 0x4, offset = 0x4, fixed_abs, tag = 'smem constant byte address 0x4 - core index']
  #allocation1 [shape = 'u32[144,128]{1,0:T(1,128)}', space=vmem, size = 0x12000, scoped, tag = 'internal scratch']
  #allocation2 [shape = 'f32[16,128]{1,0:T(8,128)}', space=vmem, size = 0x2000, scoped, tag = 'scratch operand']
  %s0 = inlined_call_operand.hbm [shape: bf16[16,128], index: 0, kind: input, shape index: {}]
  %s1 = inlined_call_operand.hbm [shape: bf16[128,128], index: 1, kind: input, shape index: {}]
  %s2 = inlined_call_operand.vmem [shape: f32[1,128], index: 2, kind: input, shape index: {}]
  %s3 = inlined_call_operand.hbm [shape: bf16[128,128], index: 3, kind: input, shape index: {}]
  %s4 = inlined_call_operand.vmem [shape: f32[1,128], index: 4, kind: input, shape index: {}]
  %s5 = inlined_call_operand.hbm [shape: f32[16,128], index: 5, kind: output, shape index: {}]
  %s6 = sld [smem:[#allocation0]]
  $region50: #{tpu_custom_call.1} parent=0
    _
  %s8 = ssub.s32 1, %s6
  %s9 = scalar_select 0, %s8, %s6
  $region1: #{tpu_custom_call.1} parent=0
    #allocation3 [shape = 'u8[4096]{0}', space=vmem, size = 0x1000, scoped, tag = 'input window, operand 0, single buffered']
    #allocation4 [shape = 's32[1]{0}', space=sflag, size = 0x4, scoped, tag = 'scoped memory for tpu_custom_call.1']
    #allocation5 [shape = 's32[1]{0}', space=sflag, size = 0x4, scoped, tag = 'scoped memory for tpu_custom_call.1']
    #allocation6 [shape = 'u8[32768]{0}', space=vmem, size = 0x8000, scoped, tag = 'input window, operand 1, single buffered']
    #allocation7 [shape = 's32[1]{0}', space=sflag, size = 0x4, scoped, tag = 'scoped memory for tpu_custom_call.1']
    #allocation8 [shape = 'u8[32768]{0}', space=vmem, size = 0x8000, scoped, tag = 'input window, operand 3, single buffered']
    #allocation9 [shape = 'u8[8192]{0}', space=vmem, size = 0x2000, scoped, tag = 'output window, operand 0, single buffered']
    %10 = vsyncpa [#allocation4], 0
    %11 = vsyncpa [#allocation7], 0
    %12 = vsyncpa [#allocation5], 0
    // Predicated region
    $region2: #{tpu_custom_call.1} parent=1 // pred_check
      _
    $region3: #{tpu_custom_call.1} parent=1 // pred_check_branch
      %14 = sbr.rel (0) target = $region5
    $region4: #{tpu_custom_call.1} parent=1 // pred_region
      %s16 = ssub.s32 128, 128
      %17 = vsyncadd [#allocation4], %s16
      %s18 = sshll.u32 [#allocation3], 4
      %s19 = int_to_ptr.vmem [resolvable:$true] %s18
      %24 = dma.hbm_to_vmem [thread:$0]  %s0, 128, %s19, [#allocation4], 64, 64, 4
    $region5: #{tpu_custom_call.1} parent=1 // pred_fallthru
      _
    // Predicated region
    $region6: #{tpu_custom_call.1} parent=1 // pred_check
      _
    $region7: #{tpu_custom_call.1} parent=1 // pred_check_branch
      %26 = sbr.rel (0) target = $region9
    $region8: #{tpu_custom_call.1} parent=1 // pred_region
      %s28 = ssub.s32 1024, 1024
      %29 = vsyncadd [#allocation7], %s28
      %s30 = sshll.u32 [#allocation6], 4
      %s31 = int_to_ptr.vmem [resolvable:$true] %s30
      %36 = dma.hbm_to_vmem [thread:$0]  %s1, 1024, %s31, [#allocation7], 64, 64, 4
    $region9: #{tpu_custom_call.1} parent=1 // pred_fallthru
      _
    // Predicated region
    $region10: #{tpu_custom_call.1} parent=1 // pred_check
      _
    $region11: #{tpu_custom_call.1} parent=1 // pred_check_branch
      %38 = sbr.rel (0) target = $region13
    $region12: #{tpu_custom_call.1} parent=1 // pred_region
      _
    $region13: #{tpu_custom_call.1} parent=1 // pred_fallthru
      _
    // Predicated region
    $region14: #{tpu_custom_call.1} parent=1 // pred_check
      _
    $region15: #{tpu_custom_call.1} parent=1 // pred_check_branch
      %40 = sbr.rel (0) target = $region17
    $region16: #{tpu_custom_call.1} parent=1 // pred_region
      %s42 = ssub.s32 1024, 1024
      %43 = vsyncadd [#allocation7], %s42
      %s44 = sshll.u32 [#allocation8], 4
      %s45 = int_to_ptr.vmem [resolvable:$true] %s44
      %50 = dma.hbm_to_vmem [thread:$0]  %s3, 1024, %s45, [#allocation7], 64, 64, 4
    $region17: #{tpu_custom_call.1} parent=1 // pred_fallthru
      _
    // Predicated region
    $region18: #{tpu_custom_call.1} parent=1 // pred_check
      _
    $region19: #{tpu_custom_call.1} parent=1 // pred_check_branch
      %52 = sbr.rel (0) target = $region21
    $region20: #{tpu_custom_call.1} parent=1 // pred_region
      _
    $region21: #{tpu_custom_call.1} parent=1 // pred_fallthru
      _
    // Predicated region
    $region22: #{tpu_custom_call.1} parent=1 // pred_check
      _
    $region23: #{tpu_custom_call.1} parent=1 // pred_check_branch
      %54 = sbr.rel (0) target = $region25
    $region24: #{tpu_custom_call.1} parent=1 // pred_region
      %55 = dma.done [#allocation4], 128
    $region25: #{tpu_custom_call.1} parent=1 // pred_fallthru
      _
    // Predicated region
    $region26: #{tpu_custom_call.1} parent=1 // pred_check
      _
    $region27: #{tpu_custom_call.1} parent=1 // pred_check_branch
      %57 = sbr.rel (0) target = $region29
    $region28: #{tpu_custom_call.1} parent=1 // pred_region
      %58 = dma.done [#allocation7], 1024
    $region29: #{tpu_custom_call.1} parent=1 // pred_fallthru
      _
    // Predicated region
    $region30: #{tpu_custom_call.1} parent=1 // pred_check
      _
    $region31: #{tpu_custom_call.1} parent=1 // pred_check_branch
      %60 = sbr.rel (0) target = $region33
    $region32: #{tpu_custom_call.1} parent=1 // pred_region
      %61 = dma.done [#allocation7], 1024
    $region33: #{tpu_custom_call.1} parent=1 // pred_fallthru
      _
    %p63 = scmp.eq.s32.totalorder 0, 0
    // Predicated region
    $region34: #{tpu_custom_call.1} parent=1 // pred_check
      %p64 = pneg %p63
    $region35: #{tpu_custom_call.1} parent=1 // pred_check_branch
      %66 = sbr.rel (%p64) target = $region37
    $region36: #{tpu_custom_call.1} parent=1 // pred_region
      %67 = vst [vmem:[#allocation2] sm:$0xff] 0.0
      %68 = vst [vmem:[#allocation2 + $0x8] sm:$0xff] 0.0
    $region37: #{tpu_custom_call.1} parent=1 // pred_fallthru
      _
    %v69 = vld [vmem:[#allocation3] sm:$0xf]
    %v70 = vld [vmem:[#allocation3 + $0x4] sm:$0xf]
    %v71 = vld [vmem:[#allocation6] sm:$0xf]
    %v72 = vld [vmem:[#allocation6 + $0x4] sm:$0xf]
    %v73 = vld [vmem:[#allocation6 + $0x8] sm:$0xf]
    %v74 = vld [vmem:[#allocation6 + $0xc] sm:$0xf]
    %v75 = vld [vmem:[#allocation6 + $0x10] sm:$0xf]
    %v76 = vld [vmem:[#allocation6 + $0x14] sm:$0xf]
    %v77 = vld [vmem:[#allocation6 + $0x18] sm:$0xf]
    %v78 = vld [vmem:[#allocation6 + $0x1c] sm:$0xf]
    %v79 = vld [vmem:[#allocation6 + $0x20] sm:$0xf]
    %v80 = vld [vmem:[#allocation6 + $0x24] sm:$0xf]
    %v81 = vld [vmem:[#allocation6 + $0x28] sm:$0xf]
    %v82 = vld [vmem:[#allocation6 + $0x2c] sm:$0xf]
    %v83 = vld [vmem:[#allocation6 + $0x30] sm:$0xf]
    %v84 = vld [vmem:[#allocation6 + $0x34] sm:$0xf]
    %v85 = vld [vmem:[#allocation6 + $0x38] sm:$0xf]
    %v86 = vld [vmem:[#allocation6 + $0x3c] sm:$0xf]
    %v87 = vld [vmem:[%s2] sm:$0x1]
    %v89 = vlaneseq
    %v90 = vshrl.u32 %v89, 7
    %v91 = vsub.s32 0, %v90
    %v92 = vrot.slane %v87, %v91
    %v96 = vunpack.c.l.b16 %v69
    %v97 = vunpack.c.l.b16 %v70
    %v98 = vpack.c.b16 %v97, %v96
    %v116 = vunpack.c.l.b16 %v71
    %v117 = vunpack.c.l.b16 %v72
    %v118 = vunpack.c.l.b16 %v73
    %v119 = vunpack.c.l.b16 %v74
    %v120 = vunpack.c.l.b16 %v75
    %v121 = vunpack.c.l.b16 %v76
    %v122 = vunpack.c.l.b16 %v77
    %v123 = vunpack.c.l.b16 %v78
    %v124 = vunpack.c.l.b16 %v79
    %v125 = vunpack.c.l.b16 %v80
    %v126 = vunpack.c.l.b16 %v81
    %v127 = vunpack.c.l.b16 %v82
    %v128 = vunpack.c.l.b16 %v83
    %v129 = vunpack.c.l.b16 %v84
    %v130 = vunpack.c.l.b16 %v85
    %v131 = vunpack.c.l.b16 %v86
    %v132 = vpack.c.b16 %v117, %v116
    %v133 = vpack.c.b16 %v119, %v118
    %v134 = vpack.c.b16 %v121, %v120
    %v135 = vpack.c.b16 %v123, %v122
    %v136 = vpack.c.b16 %v125, %v124
    %v137 = vpack.c.b16 %v127, %v126
    %v138 = vpack.c.b16 %v129, %v128
    %v139 = vpack.c.b16 %v131, %v130
    %148 = vmatprep.subr.bf16.mxu0 0
    %149 = vmatpush1.bf16.msra.mxu0 %v132
    %150 = vmatprep.subr.bf16.mxu0 0
    %151 = vmatpush1.bf16.msra.mxu0 %v133
    %152 = vmatprep.subr.bf16.mxu0 0
    %153 = vmatpush1.bf16.msra.mxu0 %v134
    %154 = vmatprep.subr.bf16.mxu0 0
    %155 = vmatpush1.bf16.msra.mxu0 %v135
    %156 = vmatprep.subr.bf16.mxu0 0
    %157 = vmatpush1.bf16.msra.mxu0 %v136
    %158 = vmatprep.subr.bf16.mxu0 0
    %159 = vmatpush1.bf16.msra.mxu0 %v137
    %160 = vmatprep.subr.bf16.mxu0 0
    %161 = vmatpush1.bf16.msra.mxu0 %v138
    %162 = vmatprep.subr.bf16.mxu0 0
    %163 = vmatpush1.bf16.msra.mxu0 %v139
    %164 = vmatprep.subr.bf16.mxu0 0
    %165 = vmatpush1.bf16.msra.mxu0 0
    %166 = vmatprep.subr.bf16.mxu0 0
    %167 = vmatpush1.bf16.msra.mxu0 0
    %168 = vmatprep.subr.bf16.mxu0 0
    %169 = vmatpush1.bf16.msra.mxu0 0
    %170 = vmatprep.subr.bf16.mxu0 0
    %171 = vmatpush1.bf16.msra.mxu0 0
    %172 = vmatprep.subr.bf16.mxu0 0
    %173 = vmatpush1.bf16.msra.mxu0 0
    %174 = vmatprep.subr.bf16.mxu0 0
    %175 = vmatpush1.bf16.msra.mxu0 0
    %176 = vmatprep.subr.bf16.mxu0 0
    %177 = vmatpush1.bf16.msra.mxu0 0
    %178 = vmatprep.subr.bf16.mxu0 0
    %179 = vmatpush1.bf16.msra.mxu0 0
    %180 = vmatprep.mubr.bf16.mxu0 0
    %181 = vmatmul.mubr.bf16.gmra.mrb[0].mxu0 %v98
    %v182 = vpop.f32.mrb[0].mxu0
    %v183 = vadd.f32 %v92, %v182
    %v184 = vpop.f32.mrb[0].mxu0
    %v185 = vpop.f32.mrb[0].mxu0
    %v186 = vadd.f32 %v92, %v185
    %v187 = vpop.f32.mrb[0].mxu0
    %188 = vdwg.mxu0
    %v189 = vpack.c.bf16 %v186, %v183
    %v190 = vld [vmem:[#allocation2] sm:$0xff]
    %v191 = vld [vmem:[#allocation2 + $0x8] sm:$0xff]
    %v192 = vld [vmem:[#allocation8] sm:$0xf]
    %v193 = vld [vmem:[#allocation8 + $0x4] sm:$0xf]
    %v194 = vld [vmem:[#allocation8 + $0x8] sm:$0xf]
    %v195 = vld [vmem:[#allocation8 + $0xc] sm:$0xf]
    %v196 = vld [vmem:[#allocation8 + $0x10] sm:$0xf]
    %v197 = vld [vmem:[#allocation8 + $0x14] sm:$0xf]
    %v198 = vld [vmem:[#allocation8 + $0x18] sm:$0xf]
    %v199 = vld [vmem:[#allocation8 + $0x1c] sm:$0xf]
    %v200 = vld [vmem:[#allocation8 + $0x20] sm:$0xf]
    %v201 = vld [vmem:[#allocation8 + $0x24] sm:$0xf]
    %v202 = vld [vmem:[#allocation8 + $0x28] sm:$0xf]
    %v203 = vld [vmem:[#allocation8 + $0x2c] sm:$0xf]
    %v204 = vld [vmem:[#allocation8 + $0x30] sm:$0xf]
    %v205 = vld [vmem:[#allocation8 + $0x34] sm:$0xf]
    %v206 = vld [vmem:[#allocation8 + $0x38] sm:$0xf]
    %v207 = vld [vmem:[#allocation8 + $0x3c] sm:$0xf]
    %v224 = vunpack.c.l.b16 %v192
    %v225 = vunpack.c.l.b16 %v193
    %v226 = vunpack.c.l.b16 %v194
    %v227 = vunpack.c.l.b16 %v195
    %v228 = vunpack.c.l.b16 %v196
    %v229 = vunpack.c.l.b16 %v197
    %v230 = vunpack.c.l.b16 %v198
    %v231 = vunpack.c.l.b16 %v199
    %v232 = vunpack.c.l.b16 %v200
    %v233 = vunpack.c.l.b16 %v201
    %v234 = vunpack.c.l.b16 %v202
    %v235 = vunpack.c.l.b16 %v203
    %v236 = vunpack.c.l.b16 %v204
    %v237 = vunpack.c.l.b16 %v205
    %v238 = vunpack.c.l.b16 %v206
    %v239 = vunpack.c.l.b16 %v207
    %v240 = vpack.c.b16 %v225, %v224
    %v241 = vpack.c.b16 %v227, %v226
    %v242 = vpack.c.b16 %v229, %v228
    %v243 = vpack.c.b16 %v231, %v230
    %v244 = vpack.c.b16 %v233, %v232
    %v245 = vpack.c.b16 %v235, %v234
    %v246 = vpack.c.b16 %v237, %v236
    %v247 = vpack.c.b16 %v239, %v238
    %256 = vmatprep.subr.bf16.mxu0 0
    %257 = vmatpush1.bf16.msra.mxu0 %v240
    %258 = vmatprep.subr.bf16.mxu0 0
    %259 = vmatpush1.bf16.msra.mxu0 %v241
    %260 = vmatprep.subr.bf16.mxu0 0
    %261 = vmatpush1.bf16.msra.mxu0 %v242
    %262 = vmatprep.subr.bf16.mxu0 0
    %263 = vmatpush1.bf16.msra.mxu0 %v243
    %264 = vmatprep.subr.bf16.mxu0 0
    %265 = vmatpush1.bf16.msra.mxu0 %v244
    %266 = vmatprep.subr.bf16.mxu0 0
    %267 = vmatpush1.bf16.msra.mxu0 %v245
    %268 = vmatprep.subr.bf16.mxu0 0
    %269 = vmatpush1.bf16.msra.mxu0 %v246
    %270 = vmatprep.subr.bf16.mxu0 0
    %271 = vmatpush1.bf16.msra.mxu0 %v247
    %272 = vmatprep.subr.bf16.mxu0 0
    %273 = vmatpush1.bf16.msra.mxu0 0
    %274 = vmatprep.subr.bf16.mxu0 0
    %275 = vmatpush1.bf16.msra.mxu0 0
    %276 = vmatprep.subr.bf16.mxu0 0
    %277 = vmatpush1.bf16.msra.mxu0 0
    %278 = vmatprep.subr.bf16.mxu0 0
    %279 = vmatpush1.bf16.msra.mxu0 0
    %280 = vmatprep.subr.bf16.mxu0 0
    %281 = vmatpush1.bf16.msra.mxu0 0
    %282 = vmatprep.subr.bf16.mxu0 0
    %283 = vmatpush1.bf16.msra.mxu0 0
    %284 = vmatprep.subr.bf16.mxu0 0
    %285 = vmatpush1.bf16.msra.mxu0 0
    %286 = vmatprep.subr.bf16.mxu0 0
    %287 = vmatpush1.bf16.msra.mxu0 0
    %288 = vmatprep.mubr.bf16.mxu0 0
    %289 = vmatmul.mubr.bf16.gmra.mrb[0].mxu0 %v189
    %v290 = vpop.f32.mrb[0].mxu0
    %v291 = vadd.f32 0.0, %v290
    %v292 = vpop.f32.mrb[0].mxu0
    %v293 = vpop.f32.mrb[0].mxu0
    %v294 = vadd.f32 0.0, %v293
    %v295 = vpop.f32.mrb[0].mxu0
    %296 = vdwg.mxu0
    %v297 = vadd.f32 %v190, %v291
    %v298 = vadd.f32 %v191, %v294
    %299 = vst [vmem:[#allocation2] sm:$0xff] %v297
    %300 = vst [vmem:[#allocation2 + $0x8] sm:$0xff] %v298
    // Predicated region
    $region38: #{tpu_custom_call.1} parent=1 // pred_check
      %p301 = pneg %p63
    $region39: #{tpu_custom_call.1} parent=1 // pred_check_branch
      %303 = sbr.rel (%p301) target = $region41
    $region40: #{tpu_custom_call.1} parent=1 // pred_region
      %v304 = vld [vmem:[#allocation2] sm:$0xff]
      %v305 = vld [vmem:[#allocation2 + $0x8] sm:$0xff]
      %v306 = vld [vmem:[%s4] sm:$0x1]
      %v308 = vlaneseq
      %v309 = vshrl.u32 %v308, 7
      %v310 = vsub.s32 0, %v309
      %v311 = vrot.slane %v306, %v310
      %v313 = vadd.f32 %v304, %v311
      %v314 = vadd.f32 %v305, %v311
      %315 = vst [vmem:[#allocation9] sm:$0xff] %v313
      %316 = vst [vmem:[#allocation9 + $0x8] sm:$0xff] %v314
    $region41: #{tpu_custom_call.1} parent=1 // pred_fallthru
      _
    // Predicated region
    $region42: #{tpu_custom_call.1} parent=1 // pred_check
      _
    $region43: #{tpu_custom_call.1} parent=1 // pred_check_branch
      %318 = sbr.rel (0) target = $region45
    $region44: #{tpu_custom_call.1} parent=1 // pred_region
      %s320 = ssub.s32 256, 256
      %321 = vsyncadd [#allocation5], %s320
      %s322 = sshll.u32 [#allocation9], 4
      %s323 = int_to_ptr.vmem [resolvable:$true] %s322
      %328 = dma.vmem_to_hbm [thread:$0]  %s323, 256, %s5, [#allocation5], 128, 128, 8
    $region45: #{tpu_custom_call.1} parent=1 // pred_fallthru
      _
    // Predicated region
    $region46: #{tpu_custom_call.1} parent=1 // pred_check
      _
    $region47: #{tpu_custom_call.1} parent=1 // pred_check_branch
      %330 = sbr.rel (0) target = $region49
    $region48: #{tpu_custom_call.1} parent=1 // pred_region
      %331 = dma.done [#allocation5], 256
    $region49: #{tpu_custom_call.1} parent=1 // pred_fallthru
      _
    %332 = vsyncpa [#allocation4], 1
    %333 = vsyncpa [#allocation7], 1
    %334 = vsyncpa [#allocation5], 1

</llo_original>
